<compile_context>
chip_gen: v7x
topology: tpu7x:2x2x1
jax: 0.10.0
libtpu: 0.0.40
codegen_flags: <defaults>
</compile_context>

<pallas_src>
import functools
import math

import jax
import jax.numpy as jnp
from jax.experimental import pallas as pl
from jax.experimental.pallas import tpu as pltpu


def _cdiv(a: int, b: int) -> int:
    return (a + b - 1) // b


def _layernorm_kernel(x_ref, alpha_ref, bias_ref, o_ref, *, eps: float, n_valid: int):
    # x_ref: (TILE_ROWS, F_PAD)   alpha_ref / bias_ref: (1, F_PAD)
    x = x_ref[...].astype(jnp.float32)
    f_pad = x.shape[-1]

    n = jnp.float32(n_valid)
    # Padded feature columns (if any) are zero, so a plain sum / n_valid is the
    # exact mean over the real features.
    mean = jnp.sum(x, axis=-1, keepdims=True) / n
    diff = x - mean

    if f_pad != n_valid:
        # Mask out padded columns for the variance reduction (their diff = -mean).
        col = jax.lax.broadcasted_iota(jnp.int32, x.shape, 1)
        diff_v = jnp.where(col < n_valid, diff, jnp.float32(0.0))
    else:
        diff_v = diff

    # torch.std default is unbiased -> divide by (n - 1).
    # NOTE: features == 1 gives inf/NaN, same as torch.std(ddof=1).
    var_unbiased = jnp.sum(diff_v * diff_v, axis=-1, keepdims=True) / jnp.float32(
        n_valid - 1
    )
    std = jnp.sqrt(var_unbiased)

    denom = std + jnp.float32(eps)                      # (TILE_ROWS, 1)
    inv = pl.reciprocal(denom, approx=True)             # EUP slot, nearly free
    inv = inv * (jnp.float32(2.0) - denom * inv)        # one Newton step -> full f32 precision

    alpha = alpha_ref[...].astype(jnp.float32)
    bias = bias_ref[...].astype(jnp.float32)

    out = alpha * (diff * inv) + bias
    o_ref[...] = out.astype(o_ref.dtype)


def _pick_tiling(rows: int, f_pad: int, itemsize: int, target_tile_bytes: int = 4 << 20):
    """Pick a sublane-aligned row tile from a VMEM byte budget, bounding padding waste."""
    sub = max(8, 32 // itemsize)  # 8 for f32, 16 for bf16, 32 for int8/fp8
    budget_rows = max(sub, (target_tile_bytes // (f_pad * itemsize)) // sub * sub)
    # At least 2 grid steps when there is enough work -> lets v7x megacore shard rows.
    num_tiles = max(_cdiv(rows, budget_rows), 2 if rows >= 2 * sub else 1)
    tile_rows = max(sub, _cdiv(_cdiv(rows, num_tiles), sub) * sub)
    rows_pad = _cdiv(rows, tile_rows) * tile_rows
    return tile_rows, rows_pad


def layer_norm_pallas(x, alpha, bias, eps: float = 1e-6):
    """x: (..., features); alpha, bias: (features,). Keeps I/O in x.dtype."""
    orig_shape = x.shape
    features = orig_shape[-1]
    rows = math.prod(orig_shape[:-1]) if len(orig_shape) > 1 else 1

    itemsize = jnp.dtype(x.dtype).itemsize

    # Lane-dense feature dim: pad to a multiple of 128 only when needed.
    f_pad = features if features % 128 == 0 else _cdiv(features, 128) * 128

    tile_rows, rows_pad = _pick_tiling(rows, f_pad, itemsize)
    grid = (rows_pad // tile_rows,)

    x2 = x.reshape(rows, features)
    if rows_pad != rows or f_pad != features:
        x2 = jnp.pad(x2, ((0, rows_pad - rows), (0, f_pad - features)))
    alpha2 = alpha.reshape(1, features)
    bias2 = bias.reshape(1, features)
    if f_pad != features:
        alpha2 = jnp.pad(alpha2, ((0, 0), (0, f_pad - features)))
        bias2 = jnp.pad(bias2, ((0, 0), (0, f_pad - features)))

    # VMEM budget: 2 (double buffer) x 2 (x in + out) x tile + params + headroom.
    tile_bytes = tile_rows * f_pad * itemsize
    vmem_limit = int(min(64 << 20, max(32 << 20, 4 * tile_bytes + (8 << 20))))

    out2 = pl.pallas_call(
        functools.partial(_layernorm_kernel, eps=eps, n_valid=features),
        out_shape=jax.ShapeDtypeStruct((rows_pad, f_pad), x.dtype),
        grid_spec=pltpu.PrefetchScalarGridSpec(
            num_scalar_prefetch=0,
            grid=grid,
            in_specs=[
                pl.BlockSpec((tile_rows, f_pad), lambda i: (i, 0)),
                pl.BlockSpec((1, f_pad), lambda i: (0, 0)),
                pl.BlockSpec((1, f_pad), lambda i: (0, 0)),
            ],
            out_specs=pl.BlockSpec((tile_rows, f_pad), lambda i: (i, 0)),
        ),
        compiler_params=pltpu.CompilerParams(
            dimension_semantics=("parallel",),
            vmem_limit_bytes=vmem_limit,
        ),
    )(x2, alpha2, bias2)

    if rows_pad != rows or f_pad != features:
        out2 = out2[:rows, :features]
    return out2.reshape(orig_shape)


def layer_norm_ref(x, alpha, bias, eps: float = 1e-6):
    """Pure-JAX reference mirroring the PyTorch forward."""
    x32 = x.astype(jnp.float32)
    mean = jnp.mean(x32, axis=-1, keepdims=True)
    std = jnp.std(x32, axis=-1, keepdims=True, ddof=1)  # unbiased, like torch.std
    return (alpha * (x32 - mean) / (std + eps) + bias).astype(x.dtype)


if __name__ == "__main__":
    key = jax.random.PRNGKey(0)

    batch, seq, hidden = 2, 8, 32  # features = hidden
    x = jax.random.normal(key, (batch, seq, hidden), dtype=jnp.float32)

    # Deterministic parameter init matching nn.Parameter(torch.ones/zeros(features))
    alpha = jnp.ones((hidden,), dtype=jnp.float32)
    bias = jnp.zeros((hidden,), dtype=jnp.float32)

    out = layer_norm_pallas(x, alpha, bias, eps=1e-6)
    out = jax.block_until_ready(out)

    ref = layer_norm_ref(x, alpha, bias, eps=1e-6)
    assert out.shape == x.shape
    assert jnp.allclose(out, ref, atol=1e-5, rtol=1e-5), "mismatch vs reference"

    print("KERNEL_OK")
</pallas_src>

<mosaic_0001>
module attributes {stable_mosaic.version = 11 : i64} {
  func.func @_layernorm_kernel(%arg0: i32, %arg1: memref<8x128xf32, #tpu.memory_space<vmem>>, %arg2: memref<1x128xf32, #tpu.memory_space<vmem>>, %arg3: memref<1x128xf32, #tpu.memory_space<vmem>>, %arg4: memref<8x128xf32, #tpu.memory_space<vmem>>) attributes {dimension_semantics = [#tpu.dimension_semantics<parallel>], iteration_bounds = array<i64: 2>, scalar_prefetch = 0 : i64, scratch_operands = 0 : i64, tpu.core_type = #tpu.core_type<tc>, window_params = [{transform_indices = @transform_0, window_bounds = array<i64: 8, 128>}, {pipeline_mode = #tpu.pipeline_mode<synchronous>, transform_indices = @transform_1, window_bounds = array<i64: 1, 128>}, {pipeline_mode = #tpu.pipeline_mode<synchronous>, transform_indices = @transform_2, window_bounds = array<i64: 1, 128>}, {transform_indices = @transform_3, window_bounds = array<i64: 8, 128>}]} {
    %c0 = arith.constant 0 : index
    %c0_0 = arith.constant 0 : index
    %0 = vector.load %arg1[%c0, %c0_0] : memref<8x128xf32, #tpu.memory_space<vmem>>, vector<8x128xf32>
    %cst = arith.constant dense<0.000000e+00> : vector<8xf32>
    %1 = vector.multi_reduction <add>, %0, %cst [1] : vector<8x128xf32> to vector<8xf32>
    %2 = vector.shape_cast %1 : vector<8xf32> to vector<8x1xf32>
    %cst_1 = arith.constant 3.200000e+01 : f32
    %3 = vector.broadcast %cst_1 : f32 to vector<8x1xf32>
    %4 = arith.divf %2, %3 : vector<8x1xf32>
    %5 = vector.broadcast %4 : vector<8x1xf32> to vector<8x128xf32>
    %6 = arith.subf %0, %5 : vector<8x128xf32>
    %7 = tpu.iota {dimensions = array<i32: 1>} : vector<8x128xi32>
    %c32_i32 = arith.constant 32 : i32
    %8 = vector.broadcast %c32_i32 : i32 to vector<8x128xi32>
    %9 = arith.cmpi slt, %7, %8 : vector<8x128xi32>
    %cst_2 = arith.constant 0.000000e+00 : f32
    %10 = vector.broadcast %cst_2 : f32 to vector<8x128xf32>
    %11 = arith.select %9, %6, %10 : vector<8x128xi1>, vector<8x128xf32>
    %12 = arith.mulf %11, %11 : vector<8x128xf32>
    %cst_3 = arith.constant dense<0.000000e+00> : vector<8xf32>
    %13 = vector.multi_reduction <add>, %12, %cst_3 [1] : vector<8x128xf32> to vector<8xf32>
    %14 = vector.shape_cast %13 : vector<8xf32> to vector<8x1xf32>
    %cst_4 = arith.constant 3.100000e+01 : f32
    %15 = vector.broadcast %cst_4 : f32 to vector<8x1xf32>
    %16 = arith.divf %14, %15 : vector<8x1xf32>
    %17 = math.sqrt %16 : vector<8x1xf32>
    %cst_5 = arith.constant 9.99999997E-7 : f32
    %18 = vector.broadcast %cst_5 : f32 to vector<8x1xf32>
    %19 = arith.addf %17, %18 : vector<8x1xf32>
    %20 = tpu.reciprocal %19 {approx = true} : vector<8x1xf32> -> vector<8x1xf32>
    %21 = arith.mulf %19, %20 : vector<8x1xf32>
    %cst_6 = arith.constant 2.000000e+00 : f32
    %22 = vector.broadcast %cst_6 : f32 to vector<8x1xf32>
    %23 = arith.subf %22, %21 : vector<8x1xf32>
    %24 = arith.mulf %20, %23 : vector<8x1xf32>
    %c0_7 = arith.constant 0 : index
    %c0_8 = arith.constant 0 : index
    %25 = vector.load %arg2[%c0_7, %c0_8] : memref<1x128xf32, #tpu.memory_space<vmem>>, vector<1x128xf32>
    %c0_9 = arith.constant 0 : index
    %c0_10 = arith.constant 0 : index
    %26 = vector.load %arg3[%c0_9, %c0_10] : memref<1x128xf32, #tpu.memory_space<vmem>>, vector<1x128xf32>
    %27 = vector.broadcast %24 : vector<8x1xf32> to vector<8x128xf32>
    %28 = arith.mulf %6, %27 : vector<8x128xf32>
    %29 = vector.broadcast %25 : vector<1x128xf32> to vector<8x128xf32>
    %30 = arith.mulf %29, %28 : vector<8x128xf32>
    %31 = vector.broadcast %26 : vector<1x128xf32> to vector<8x128xf32>
    %32 = arith.addf %30, %31 : vector<8x128xf32>
    %c0_11 = arith.constant 0 : index
    %c0_12 = arith.constant 0 : index
    %33 = vector.load %arg4[%c0_11, %c0_12] : memref<8x128xf32, #tpu.memory_space<vmem>>, vector<8x128xf32>
    tpu.vector_store %arg4[%c0_11, %c0_12], %32 {strides = array<i32>} : memref<8x128xf32, #tpu.memory_space<vmem>>, vector<8x128xf32>,
    return
  }
  func.func @transform_0(%arg0: i32) -> (i32, i32) {
    %c0_i32 = arith.constant 0 : i32
    %c0_i32_0 = arith.constant 0 : i32
    return %arg0, %c0_i32 : i32, i32
  }
  func.func @transform_1(%arg0: i32) -> (i32, i32) {
    %c0_i32 = arith.constant 0 : i32
    %c0_i32_0 = arith.constant 0 : i32
    %c0_i32_1 = arith.constant 0 : i32
    return %c0_i32, %c0_i32_0 : i32, i32
  }
  func.func @transform_2(%arg0: i32) -> (i32, i32) {
    %c0_i32 = arith.constant 0 : i32
    %c0_i32_0 = arith.constant 0 : i32
    %c0_i32_1 = arith.constant 0 : i32
    return %c0_i32, %c0_i32_0 : i32, i32
  }
  func.func @transform_3(%arg0: i32) -> (i32, i32) {
    %c0_i32 = arith.constant 0 : i32
    %c0_i32_0 = arith.constant 0 : i32
    return %arg0, %c0_i32 : i32, i32
  }
}

</mosaic_0001>

<llo_original>
// kernel: tpu_custom_call.1
$region0: #{tpu_custom_call.1}
  #allocation0 [shape = 'u32[]', space=smem, size = 0x4, offset = 0x4, fixed_abs, tag = 'smem constant byte address 0x4 - core index']
  #allocation1 [shape = 'u32[144,128]{1,0:T(1,128)}', space=vmem, size = 0x12000, scoped, tag = 'internal scratch']
  %s0 = inlined_call_operand.hbm [shape: f32[16,128], index: 0, kind: input, shape index: {}]
  %s1 = inlined_call_operand.vmem [shape: f32[1,128], index: 1, kind: input, shape index: {}]
  %s2 = inlined_call_operand.vmem [shape: f32[1,128], index: 2, kind: input, shape index: {}]
  %s3 = inlined_call_operand.hbm [shape: f32[16,128], index: 3, kind: output, shape index: {}]
  %s4 = sld [smem:[#allocation0]]
  $region49: #{tpu_custom_call.1} parent=0
    _
  %s6 = ssub.s32 1, %s4
  %s7 = scalar_select 0, %s6, %s4
  $region1: #{tpu_custom_call.1} parent=0
    #allocation2 [shape = 'u8[8192]{0}', space=vmem, size = 0x2000, scoped, tag = 'input window, operand 0']
    #allocation3 [shape = 's32[2]{0}', space=sflag, size = 0x8, scoped, tag = 'scoped memory for tpu_custom_call.1']
    #allocation4 [shape = 's32[2]{0}', space=sflag, size = 0x8, scoped, tag = 'scoped memory for tpu_custom_call.1']
    #allocation5 [shape = 'u8[8192]{0}', space=vmem, size = 0x2000, scoped, tag = 'output window, operand 0']
    %8 = vsyncpa [#allocation3], 0
    %s9 = scalar_lea.sflag [#allocation3], 1
    %10 = vsyncpa %s9, 0
    %11 = vsyncpa [#allocation4], 0
    %s12 = scalar_lea.sflag [#allocation4], 1
    %13 = vsyncpa %s12, 0
    loop: start=0, step=1, limit=4
    $region2: #{tpu_custom_call.1} parent=1 // loop_pre_header
      _
    $region3: #{tpu_custom_call.1} parent=1 // loop_header
      %s15 = sphi 0, %s19
      %p16 = scmp.ge.s32.totalorder %s15, 4
      %s25 = sphi 0, %s27
      %s28 = sphi 0, %s25
      %s29 = sphi 0, %s28
      %s45 = sphi 0, %s29
      %s49 = sphi 0, %s49
      %s51 = sphi 0, %s49
      %s52 = sphi 0, %s51
      %s66 = sphi 0, %s52
      %s70 = sphi 0, %s70
      %s72 = sphi 0, %s70
      %s73 = sphi 0, %s72
      %s87 = sphi 0, %s73
      %s93 = sphi 0, %s95
      %s96 = sphi 0, %s93
      %s97 = sphi 0, %s96
      %s113 = sphi 0, %s97
    $region4: #{tpu_custom_call.1} parent=1 // loop_header_branch
      %18 = sbr.rel (%p16) target = $region8
    $region5: #{tpu_custom_call.1} parent=1 // loop_body
      %s20 = ssub.s32 %s15, 1
      %s21 = ssub.s32 %s15, 2
      %s22 = sadd.s32 %s15, 1
      %s23 = ssub.s32 %s15, %s22
      %p24 = scmp.eq.s32.totalorder %s23, 0
      %s26 = sadd.s32 %s25, 1
      %s27 = scalar_select %p24, %s25, %s26
      %p30 = pneg %p24
      %p31 = scmp.eq.s32.totalorder %s15, 1
      %p32 = por %p30, %p31
      %p33 = scmp.ne.s32.totalorder %s25, %s28
      %p34 = scmp.eq.s32.totalorder %s15, 0
      %p35 = por %p33, %p34
      %p36 = scmp.ne.s32.totalorder %s25, %s28
      %p37 = scmp.eq.s32.totalorder %s20, 1
      %p38 = por %p36, %p37
      %p39 = scmp.ne.s32.totalorder %s28, %s29
      %p40 = scmp.eq.s32.totalorder %s20, 0
      %p41 = por %p39, %p40
      %p42 = scmp.ne.s32.totalorder %s28, %s29
      %p43 = scmp.eq.s32.totalorder %s21, 1
      %p44 = por %p42, %p43
      %p46 = scmp.ne.s32.totalorder %s29, %s45
      %p47 = scmp.eq.s32.totalorder %s21, 0
      %p48 = por %p46, %p47
      %s50 = sadd.s32 %s49, 1
      %p53 = scmp.eq.s32.totalorder %s15, 1
      %p54 = scmp.ne.s32.totalorder %s49, %s51
      %p55 = scmp.eq.s32.totalorder %s15, 0
      %p56 = por %p54, %p55
      %p57 = scmp.ne.s32.totalorder %s49, %s51
      %p58 = scmp.eq.s32.totalorder %s20, 1
      %p59 = por %p57, %p58
      %p60 = scmp.ne.s32.totalorder %s51, %s52
      %p61 = scmp.eq.s32.totalorder %s20, 0
      %p62 = por %p60, %p61
      %p63 = scmp.ne.s32.totalorder %s51, %s52
      %p64 = scmp.eq.s32.totalorder %s21, 1
      %p65 = por %p63, %p64
      %p67 = scmp.ne.s32.totalorder %s52, %s66
      %p68 = scmp.eq.s32.totalorder %s21, 0
      %p69 = por %p67, %p68
      %s71 = sadd.s32 %s70, 1
      %p74 = scmp.eq.s32.totalorder %s15, 1
      %p75 = scmp.ne.s32.totalorder %s70, %s72
      %p76 = scmp.eq.s32.totalorder %s15, 0
      %p77 = por %p75, %p76
      %p78 = scmp.ne.s32.totalorder %s70, %s72
      %p79 = scmp.eq.s32.totalorder %s20, 1
      %p80 = por %p78, %p79
      %p81 = scmp.ne.s32.totalorder %s72, %s73
      %p82 = scmp.eq.s32.totalorder %s20, 0
      %p83 = por %p81, %p82
      %p84 = scmp.ne.s32.totalorder %s72, %s73
      %p85 = scmp.eq.s32.totalorder %s21, 1
      %p86 = por %p84, %p85
      %p88 = scmp.ne.s32.totalorder %s73, %s87
      %p89 = scmp.eq.s32.totalorder %s21, 0
      %p90 = por %p88, %p89
      %s91 = ssub.s32 %s15, %s22
      %p92 = scmp.eq.s32.totalorder %s91, 0
      %s94 = sadd.s32 %s93, 1
      %s95 = scalar_select %p92, %s93, %s94
      %p98 = pneg %p92
      %p99 = scmp.eq.s32.totalorder %s15, 1
      %p100 = por %p98, %p99
      %p101 = scmp.ne.s32.totalorder %s93, %s96
      %p102 = scmp.eq.s32.totalorder %s15, 0
      %p103 = por %p101, %p102
      %p104 = scmp.ne.s32.totalorder %s93, %s96
      %p105 = scmp.eq.s32.totalorder %s20, 1
      %p106 = por %p104, %p105
      %p107 = scmp.ne.s32.totalorder %s96, %s97
      %p108 = scmp.eq.s32.totalorder %s20, 0
      %p109 = por %p107, %p108
      %p110 = scmp.ne.s32.totalorder %s96, %s97
      %p111 = scmp.eq.s32.totalorder %s21, 1
      %p112 = por %p110, %p111
      %p114 = scmp.ne.s32.totalorder %s97, %s113
      %p115 = scmp.eq.s32.totalorder %s21, 0
      %p116 = por %p114, %p115
      %p117 = scmp.le.s32.totalorder 1, %s15
      %p118 = scmp.lt.s32.totalorder %s15, 3
      %p119 = pnand %p117, %p118
      %p120 = pneg %p119
      // Predicated region
      $region9: #{tpu_custom_call.1} parent=5 // pred_check
        _
      $region10: #{tpu_custom_call.1} parent=5 // pred_check_branch
        %122 = sbr.rel (%p119) target = $region12
      $region11: #{tpu_custom_call.1} parent=5 // pred_region
        %s123 = ssub.s32 %s15, 1
        // Predicated region
        $region13: #{tpu_custom_call.1} parent=11 // pred_check
          %p124 = pneg %p62
        $region14: #{tpu_custom_call.1} parent=11 // pred_check_branch
          %126 = sbr.rel (%p124) target = $region16
        $region15: #{tpu_custom_call.1} parent=11 // pred_region
          _
        $region16: #{tpu_custom_call.1} parent=11 // pred_fallthru
          _
        // Predicated region
        $region17: #{tpu_custom_call.1} parent=11 // pred_check
          %p127 = pneg %p83
        $region18: #{tpu_custom_call.1} parent=11 // pred_check_branch
          %129 = sbr.rel (%p127) target = $region20
        $region19: #{tpu_custom_call.1} parent=11 // pred_region
          _
        $region20: #{tpu_custom_call.1} parent=11 // pred_fallthru
          _
      $region12: #{tpu_custom_call.1} parent=5 // pred_fallthru
        _
      %p130 = scmp.lt.s32.totalorder %s15, 2
      // Predicated region
      $region21: #{tpu_custom_call.1} parent=5 // pred_check
        %p131 = pneg %p130
      $region22: #{tpu_custom_call.1} parent=5 // pred_check_branch
        %133 = sbr.rel (%p131) target = $region24
      $region23: #{tpu_custom_call.1} parent=5 // pred_region
        // Predicated region
        $region25: #{tpu_custom_call.1} parent=23 // pred_check
          %p134 = pneg %p35
        $region26: #{tpu_custom_call.1} parent=23 // pred_check_branch
          %136 = sbr.rel (%p134) target = $region28
        $region27: #{tpu_custom_call.1} parent=23 // pred_region
          %s137 = sand.u32 %s25, 1
          %s138 = scalar_lea.sflag [#allocation3], %s137
          %s139 = sand.u32 %s25, 1
          %s140 = smul.addr %s139, 8
          %s141 = scalar_lea.vmem [#allocation2], %s140
          %s143 = ssub.s32 128, 128
          %144 = vsyncadd %s138, %s143
          %s145 = smul.addr %s15, 128
          %s146 = scalar_lea.hbm %s0, %s145
          %s148 = sshll.u32 %s141, 4
          %s149 = int_to_ptr.vmem [resolvable:$true] %s148
          %151 = dma.hbm_to_vmem [thread:$0]  %s146, 128, %s149, %s138
        $region28: #{tpu_custom_call.1} parent=23 // pred_fallthru
          _
      $region24: #{tpu_custom_call.1} parent=5 // pred_fallthru
        _
      %p152 = scmp.le.s32.totalorder 1, %s15
      %p153 = scmp.lt.s32.totalorder %s15, 3
      %p154 = pnand %p152, %p153
      %p155 = pneg %p154
      // Predicated region
      $region29: #{tpu_custom_call.1} parent=5 // pred_check
        _
      $region30: #{tpu_custom_call.1} parent=5 // pred_check_branch
        %157 = sbr.rel (%p154) target = $region32
      $region31: #{tpu_custom_call.1} parent=5 // pred_region
        %s158 = ssub.s32 %s15, 1
        %s159 = sand.u32 %s28, 1
        %s160 = scalar_lea.sflag [#allocation3], %s159
        %s161 = sand.u32 %s28, 1
        %s162 = smul.addr %s161, 8
        %s163 = scalar_lea.vmem [#allocation2], %s162
        // Predicated region
        $region33: #{tpu_custom_call.1} parent=31 // pred_check
          %p164 = pneg %p41
        $region34: #{tpu_custom_call.1} parent=31 // pred_check_branch
          %166 = sbr.rel (%p164) target = $region36
        $region35: #{tpu_custom_call.1} parent=31 // pred_region
          %167 = dma.done %s160, 128
        $region36: #{tpu_custom_call.1} parent=31 // pred_fallthru
          _
        %s168 = sand.u32 %s28, 1
        %s169 = scalar_lea.sflag [#allocation3], %s168
        %s170 = sand.u32 %s28, 1
        %s171 = smul.addr %s170, 8
        %s172 = scalar_lea.vmem [#allocation2], %s171
        %p173 = pneg %p41
        %p174 = pneg %p38
        %p175 = pneg %p62
        %p176 = pneg %p59
        %p177 = pneg %p83
        %p178 = pneg %p80
        %p179 = pneg %p109
        %p180 = pneg %p106
        %s181 = sand.u32 %s96, 1
        %s182 = scalar_lea.sflag [#allocation4], %s181
        %s183 = sand.u32 %s96, 1
        %s184 = smul.addr %s183, 8
        %s185 = scalar_lea.vmem [#allocation5], %s184
        %v186 = vld [vmem:[%s163] sm:$0xff]
        %187 = vadd.xlane.f32.xlu0 %v186
        %v188 = vpop.xlane.xlu0 %187
        %v189 = vrcp.pop 32.0
        %v190 = vmul.f32 %v188, %v189
        %v191 = vsub.f32 %v186, %v190
        %v192 = vlaneseq
        %v193 = vand.u32 %v192, 127
        %vm194 = vcmp.lt.s32.totalorder %v193, 32
        %v195 = vsel %vm194, %v191, 0.0
        %v196 = vmul.f32 %v195, %v195
        %197 = vadd.xlane.f32.xlu0 %v196
        %v198 = vpop.xlane.xlu0 %197
        %v199 = vrcp.pop 31.0
        %v200 = vmul.f32 %v198, %v199
        %v201 = vrsqrt.pop %v200
        %v202 = vmul.f32 %v200, %v201
        %vm203 = vcmp.eq.f32.partialorder %v200, inf
        %v204 = vsel %vm203, %v200, %v202
        %vm205 = vcmp.eq.f32.partialorder %v200, 0.0
        %v206 = vand.u32 %v200, 2147483648
        %v207 = vsel %vm205, %v206, %v204
        %v208 = vadd.f32 %v207, 1e-06
        %v209 = vrcp.pop %v208
        %v210 = vmul.f32 %v208, %v209
        %v211 = vsub.f32 2.0, %v210
        %v212 = vmul.f32 %v209, %v211
        %v213 = vld [vmem:[%s1] sm:$0x1]
        %v214 = vld [vmem:[%s2] sm:$0x1]
        %v215 = vmul.f32 %v191, %v212
        %v217 = vlaneseq
        %v218 = vshrl.u32 %v217, 7
        %v219 = vsub.s32 0, %v218
        %v220 = vrot.slane %v213, %v219
        %v222 = vmul.f32 %v220, %v215
        %v224 = vlaneseq
        %v225 = vshrl.u32 %v224, 7
        %v226 = vsub.s32 0, %v225
        %v227 = vrot.slane %v214, %v226
        %v229 = vadd.f32 %v222, %v227
        %230 = vst [vmem:[%s185] sm:$0xff] %v229
        %s231 = sand.u32 %s96, 1
        %s232 = scalar_lea.sflag [#allocation4], %s231
        %s233 = sand.u32 %s96, 1
        %s234 = smul.addr %s233, 8
        %s235 = scalar_lea.vmem [#allocation5], %s234
        // Predicated region
        $region37: #{tpu_custom_call.1} parent=31 // pred_check
          %p236 = pneg %p106
        $region38: #{tpu_custom_call.1} parent=31 // pred_check_branch
          %238 = sbr.rel (%p236) target = $region40
        $region39: #{tpu_custom_call.1} parent=31 // pred_region
          %s240 = ssub.s32 128, 128
          %241 = vsyncadd %s232, %s240
          %s242 = smul.addr %s20, 128
          %s243 = scalar_lea.hbm %s3, %s242
          %s245 = sshll.u32 %s235, 4
          %s246 = int_to_ptr.vmem [resolvable:$true] %s245
          %248 = dma.vmem_to_hbm [thread:$0]  %s246, 128, %s243, %s232
        $region40: #{tpu_custom_call.1} parent=31 // pred_fallthru
          _
      $region32: #{tpu_custom_call.1} parent=5 // pred_fallthru
        _
      %p249 = scmp.le.s32.totalorder 2, %s15
      // Predicated region
      $region41: #{tpu_custom_call.1} parent=5 // pred_check
        %p250 = pneg %p249
      $region42: #{tpu_custom_call.1} parent=5 // pred_check_branch
        %252 = sbr.rel (%p250) target = $region44
      $region43: #{tpu_custom_call.1} parent=5 // pred_region
        %s253 = ssub.s32 %s15, 2
        // Predicated region
        $region45: #{tpu_custom_call.1} parent=43 // pred_check
          %p254 = pneg %p112
        $region46: #{tpu_custom_call.1} parent=43 // pred_check_branch
          %256 = sbr.rel (%p254) target = $region48
        $region47: #{tpu_custom_call.1} parent=43 // pred_region
          %s257 = sand.u32 %s97, 1
          %s258 = scalar_lea.sflag [#allocation4], %s257
          %s259 = sand.u32 %s97, 1
          %s260 = smul.addr %s259, 8
          %s261 = scalar_lea.vmem [#allocation5], %s260
          %262 = dma.done %s258, 128
        $region48: #{tpu_custom_call.1} parent=43 // pred_fallthru
          _
      $region44: #{tpu_custom_call.1} parent=5 // pred_fallthru
        _
    $region6: #{tpu_custom_call.1} parent=1 // loop_footer
      %s19 = sadd.s32 1, %s15
    $region7: #{tpu_custom_call.1} parent=1 // loop_footer_branch
      %14 = sbr.rel target = $region3
    $region8: #{tpu_custom_call.1} parent=1 // loop_exit
      _
    %263 = vsyncpa [#allocation3], 1
    %s264 = scalar_lea.sflag [#allocation3], 1
    %265 = vsyncpa %s264, 1
    %266 = vsyncpa [#allocation4], 1
    %s267 = scalar_lea.sflag [#allocation4], 1
    %268 = vsyncpa %s267, 1

</llo_original>
